<compile_context>
chip_gen: v5e
topology: v5e:2x2
jax: 0.10.0
libtpu: 0.0.40
codegen_flags: <defaults>
</compile_context>

<pallas_src>
import functools
import math

import numpy as np
import jax
import jax.numpy as jnp
from jax.experimental import pallas as pl
from jax.experimental.pallas import tpu as pltpu

NUM_HEADS = 4


def _round_up(n, m):
    return ((n + m - 1) // m) * m


def _tpu_tuning():
    """Generation-aware (vmem_limit_bytes, native matmul tile width)."""
    kind = ""
    try:
        kind = jax.devices()[0].device_kind.lower()
    except Exception:
        pass
    vmem_phys = None
    try:
        vmem_phys = int(pltpu.get_tpu_info().vmem_capacity_bytes)
    except Exception:
        pass
    # 128-wide MXU generations -> tn=128; v6e/v7x (256-wide MXU) -> tn=256.
    tn = 128 if any(v in kind for v in ("v2", "v3", "v4", "v5")) else 256
    if vmem_phys:
        limit = min((vmem_phys * 3) // 4, 96 * 1024 * 1024)
    elif "7" in kind:          # v7x: 64 MiB physical VMEM per TensorCore
        limit = 48 * 1024 * 1024
    else:                      # v5e / v6e: 128 MiB physical
        limit = 96 * 1024 * 1024
    return limit, tn


_VMEM_LIMIT, _TN = _tpu_tuning()


# -----------------------------------------------------------------------------
# Pallas kernels
# -----------------------------------------------------------------------------

def _ln_linear_kernel(*refs, use_ln, act, has_res):
    if has_res:
        x_ref, g_ref, b_ref, w_ref, wb_ref, r_ref, o_ref = refs
    else:
        x_ref, g_ref, b_ref, w_ref, wb_ref, o_ref = refs
        r_ref = None
    if use_ln:
        x = x_ref[...].astype(jnp.float32)                      # LN in f32
        mu = jnp.mean(x, axis=-1, keepdims=True)
        var = jnp.mean(jnp.square(x - mu), axis=-1, keepdims=True)
        x = (x - mu) * jax.lax.rsqrt(var + 1e-5)
        x = (x * g_ref[...] + b_ref[...]).astype(jnp.bfloat16)
    else:
        x = x_ref[...].astype(jnp.bfloat16)
    # bf16 MXU inputs, f32 accumulation
    y = jnp.dot(x, w_ref[...], preferred_element_type=jnp.float32) + wb_ref[...]
    if act == "relu":
        y = jnp.maximum(y, 0.0)
    elif act == "sigmoid":
        y = 1.0 / (1.0 + jnp.exp(-y))        # exact: output must stay in [0, 1]
    if has_res:
        y = y + r_ref[...].astype(jnp.float32)                  # fused residual add
    o_ref[...] = y.astype(o_ref.dtype)


def pallas_linear(x, lp, *, act="none", residual=None, out_dtype=jnp.float32):
    """y = act(Linear(LayerNorm(x))) [+ residual]; lp is a prepped param dict."""
    din = x.shape[-1]
    dout = lp["dout"]
    dout_p = lp["W"].shape[1]                                   # multiple of 128
    lead = x.shape[:-1]
    x2 = x.reshape(-1, din)
    n = x2.shape[0]
    if n >= 512:
        tm = 512
    elif n >= 256:
        tm = 256
    elif n >= 128:
        tm = 128
    else:
        tm = _round_up(n, 8)
    n_pad = _round_up(n, tm)
    if n_pad != n:
        x2 = jnp.pad(x2, ((0, n_pad - n), (0, 0)))
    tn = _TN if dout_p % _TN == 0 else 128                      # lane-dense output tile
    has_res = residual is not None

    operands = [x2, lp["gamma"], lp["beta"], lp["W"], lp["b"]]
    in_specs = [
        pl.BlockSpec((tm, din), lambda j, i: (i, 0)),
        pl.BlockSpec((1, din), lambda j, i: (0, 0)),
        pl.BlockSpec((1, din), lambda j, i: (0, 0)),
        pl.BlockSpec((din, tn), lambda j, i: (0, j)),           # weight tiled on dout
        pl.BlockSpec((1, tn), lambda j, i: (0, j)),
    ]
    if has_res:
        r2 = residual.reshape(-1, residual.shape[-1]).astype(jnp.float32)
        r2 = jnp.pad(r2, ((0, n_pad - n), (0, dout_p - dout)))
        operands.append(r2)
        in_specs.append(pl.BlockSpec((tm, tn), lambda j, i: (i, j)))

    # Grid order: dout tiles outer, row tiles INNER -> the weight block index is
    # constant across the inner sweep (stays resident), activations stream.
    out = pl.pallas_call(
        functools.partial(_ln_linear_kernel, use_ln=lp["use_ln"], act=act,
                          has_res=has_res),
        out_shape=jax.ShapeDtypeStruct((n_pad, dout_p), out_dtype),
        grid=(dout_p // tn, n_pad // tm),
        in_specs=in_specs,
        out_specs=pl.BlockSpec((tm, tn), lambda j, i: (i, j)),
        compiler_params=pltpu.CompilerParams(
            dimension_semantics=("parallel", "parallel"),
            vmem_limit_bytes=_VMEM_LIMIT),
    )(*operands)
    return out[:n, :dout].reshape(*lead, dout)


def _ffn_kernel(x_ref, g1_ref, b1_ref, w1_ref, c1_ref,
                g2_ref, b2_ref, w2_ref, c2_ref, r_ref, o_ref):
    def ln(v, g, b):
        mu = jnp.mean(v, axis=-1, keepdims=True)
        var = jnp.mean(jnp.square(v - mu), axis=-1, keepdims=True)
        return (v - mu) * jax.lax.rsqrt(var + 1e-5) * g + b

    x = x_ref[...].astype(jnp.float32)
    h = ln(x, g1_ref[...], b1_ref[...])
    h = jnp.dot(h.astype(jnp.bfloat16), w1_ref[...],
                preferred_element_type=jnp.float32) + c1_ref[...]
    h = jnp.maximum(h, 0.0)
    h = ln(h, g2_ref[...], b2_ref[...])
    y = jnp.dot(h.astype(jnp.bfloat16), w2_ref[...],
                preferred_element_type=jnp.float32) + c2_ref[...]
    o_ref[...] = y + r_ref[...].astype(jnp.float32)             # fused residual add


def pallas_ffn(x, fp, *, residual):
    """Fused FeedForward: LN -> W1 -> ReLU -> LN -> W2 (+ residual) in one kernel."""
    # TODO(synk): at realistic dmid/dout, tile W2 along a second dout grid axis and
    # single-buffer constant weight blocks (pl.Buffered(1)) to keep v7x VMEM in bounds.
    lead = x.shape[:-1]
    din = x.shape[-1]
    dmid = fp["W1"].shape[1]
    dout = fp["dout"]
    dout_p = fp["W2"].shape[1]
    x2 = x.reshape(-1, din)
    n = x2.shape[0]
    tm = 128 if n >= 128 else _round_up(n, 8)
    n_pad = _round_up(n, tm)
    if n_pad != n:
        x2 = jnp.pad(x2, ((0, n_pad - n), (0, 0)))
    r2 = residual.reshape(-1, residual.shape[-1]).astype(jnp.float32)
    r2 = jnp.pad(r2, ((0, n_pad - n), (0, dout_p - dout)))

    out = pl.pallas_call(
        _ffn_kernel,
        out_shape=jax.ShapeDtypeStruct((n_pad, dout_p), jnp.float32),
        grid=(n_pad // tm,),
        in_specs=[
            pl.BlockSpec((tm, din), lambda i: (i, 0)),
            pl.BlockSpec((1, din), lambda i: (0, 0)),
            pl.BlockSpec((1, din), lambda i: (0, 0)),
            pl.BlockSpec((din, dmid), lambda i: (0, 0)),
            pl.BlockSpec((1, dmid), lambda i: (0, 0)),
            pl.BlockSpec((1, dmid), lambda i: (0, 0)),
            pl.BlockSpec((1, dmid), lambda i: (0, 0)),
            pl.BlockSpec((dmid, dout_p), lambda i: (0, 0)),
            pl.BlockSpec((1, dout_p), lambda i: (0, 0)),
            pl.BlockSpec((tm, dout_p), lambda i: (i, 0)),
        ],
        out_specs=pl.BlockSpec((tm, dout_p), lambda i: (i, 0)),
        compiler_params=pltpu.CompilerParams(
            dimension_semantics=("parallel",),
            vmem_limit_bytes=_VMEM_LIMIT),
    )(x2, fp["g1"], fp["b1"], fp["W1"], fp["c1"],
      fp["g2"], fp["b2"], fp["W2"], fp["c2"], r2)
    return out[:n, :dout].reshape(*lead, dout)


def _attn_kernel(q_ref, k_ref, v_ref, o_ref, *, heads, scale, causal):
    # One grid step handles ALL heads of one batch element; (B, T, D) layout in and out
    # (lane-dense output), bf16 MXU inputs with f32 accumulation.
    Tq, D = q_ref.shape[1], q_ref.shape[2]
    Tk = k_ref.shape[1]
    dh = D // heads
    q = q_ref[0].astype(jnp.bfloat16)                           # (Tq, D)
    k = k_ref[0].astype(jnp.bfloat16)                           # (Tk, D)
    v = v_ref[0].astype(jnp.bfloat16)                           # (Tk, D)
    if causal:
        qi = jax.lax.broadcasted_iota(jnp.int32, (Tq, Tk), 0)
        kj = jax.lax.broadcasted_iota(jnp.int32, (Tq, Tk), 1)
        neg = jnp.where(kj > qi, -1e30, 0.0)
    outs = []
    for h in range(heads):                                      # static unroll (H=4)
        qh = q[:, h * dh:(h + 1) * dh]
        kh = k[:, h * dh:(h + 1) * dh]
        vh = v[:, h * dh:(h + 1) * dh]
        s = jax.lax.dot_general(qh, kh, (((1,), (1,)), ((), ())),
                                preferred_element_type=jnp.float32) * scale
        if causal:
            s = s + neg
        m = jnp.max(s, axis=-1, keepdims=True)
        p = jnp.exp(s - m)
        p = p * pl.reciprocal(jnp.sum(p, axis=-1, keepdims=True), approx=True)
        outs.append(jnp.dot(p.astype(jnp.bfloat16), vh,
                            preferred_element_type=jnp.float32))
    o_ref[0] = jnp.concatenate(outs, axis=-1).astype(o_ref.dtype)


def pallas_attention(q, k, v, *, heads, causal):
    """q: (B, Tq, D); k, v: (B, Tk, D) -> (B, Tq, D) bf16. One grid step per batch."""
    B, Tq, D = q.shape
    Tk = k.shape[1]
    scale = 1.0 / math.sqrt(D // heads)
    return pl.pallas_call(
        functools.partial(_attn_kernel, heads=heads, scale=scale, causal=causal),
        out_shape=jax.ShapeDtypeStruct((B, Tq, D), jnp.bfloat16),
        grid=(B,),
        in_specs=[
            pl.BlockSpec((1, Tq, D), lambda i: (i, 0, 0)),
            pl.BlockSpec((1, Tk, D), lambda i: (i, 0, 0)),
            pl.BlockSpec((1, Tk, D), lambda i: (i, 0, 0)),
        ],
        out_specs=pl.BlockSpec((1, Tq, D), lambda i: (i, 0, 0)),
        compiler_params=pltpu.CompilerParams(
            dimension_semantics=("parallel",),
            vmem_limit_bytes=_VMEM_LIMIT),
    )(q, k, v)


def _fetch_kernel(src_ref, hid_ref, o_ref):
    # src_ref: SMEM (B, S) int32 row indices, -1 marks padded output rows.
    b = pl.program_id(0)
    S = o_ref.shape[1]

    def body(s, carry):
        idx = src_ref[b, s]
        safe = jnp.maximum(idx, 0)
        row = hid_ref[0, pl.ds(safe, 1), :]                     # dynamic row gather
        o_ref[0, pl.ds(s, 1), :] = jnp.where(idx >= 0, row, jnp.zeros_like(row))
        return carry

    jax.lax.fori_loop(0, S, body, 0)


def pallas_fetch(hid, src):
    """hid: (B, T, D); src: (B, S) int32 row indices (-1 = padded row) -> (B, S, D)."""
    B, T, D = hid.shape
    S = src.shape[1]
    return pl.pallas_call(
        _fetch_kernel,
        out_shape=jax.ShapeDtypeStruct((B, S, D), hid.dtype),
        grid_spec=pltpu.PrefetchScalarGridSpec(
            num_scalar_prefetch=1,
            grid=(B,),
            in_specs=[pl.BlockSpec((1, T, D), lambda b, src: (b, 0, 0))],
            out_specs=pl.BlockSpec((1, S, D), lambda b, src: (b, 0, 0)),
        ),
        compiler_params=pltpu.CompilerParams(
            dimension_semantics=("arbitrary",),
            vmem_limit_bytes=_VMEM_LIMIT),
    )(src, hid)


# -----------------------------------------------------------------------------
# Fetcher.forward  (the spec module)
# -----------------------------------------------------------------------------

def fetcher(img, hid, seq, SOC, EOS):
    """Fetcher.forward(img, hid, seq) -> (hid, ext). Row gather runs on device."""
    del img
    B, T, D = hid.shape
    soc = jnp.isin(seq, jnp.asarray(SOC, dtype=seq.dtype))
    eos = jnp.isin(seq, jnp.asarray(EOS, dtype=seq.dtype))
    keep = soc & (jnp.cumsum(eos.astype(jnp.int32), axis=1) == 0)
    counts = jnp.sum(keep.astype(jnp.int32), axis=1)                 # (B,)
    # kept positions first (stable) -> per-row source indices, in sequence order
    order = jnp.argsort((~keep).astype(jnp.int32), axis=1, stable=True).astype(jnp.int32)

    # TODO(synk): the output width is data dependent (soc.sum(dim=1).max()); a single
    # scalar device->host sync is unavoidable to build the static output shape.
    size = int(jax.device_get(jnp.max(counts)))
    if size == 0:
        return hid, jnp.zeros((B, 0, D), hid.dtype)

    # Bucket the padded width (power of two, >= 8) to bound recompilation churn.
    s_pad = max(8, 1 << (size - 1).bit_length())
    if s_pad <= T:
        src = order[:, :s_pad]
    else:
        src = jnp.pad(order, ((0, 0), (0, s_pad - T)))
    j = jnp.arange(s_pad, dtype=jnp.int32)[None, :]
    src = jnp.where(j < counts[:, None], src, -1).astype(jnp.int32)  # -1 = pad row
    ext = pallas_fetch(hid, src)
    return hid, ext[:, :size]


# -----------------------------------------------------------------------------
# Model glue (plain JAX around the Pallas kernels)
# -----------------------------------------------------------------------------

# TODO(synk): `build_attention` config is not given in the source; implemented as
# standard multi-head attention (causal mask on self-attention, none on cross).
def mha(p, x, y, *, heads, causal, self_attn, residual):
    D = x.shape[-1]
    if self_attn:
        qkv = pallas_linear(x, p["qkv"], out_dtype=jnp.bfloat16)   # fused Q|K|V
        q, k, v = qkv[..., :D], qkv[..., D:2 * D], qkv[..., 2 * D:]
    else:
        q = pallas_linear(x, p["q"], out_dtype=jnp.bfloat16)
        kv = pallas_linear(y, p["kv"], out_dtype=jnp.bfloat16)     # fused K|V
        k, v = kv[..., :D], kv[..., D:]
    o = pallas_attention(q, k, v, heads=heads, causal=causal)
    return pallas_linear(o, p["o"], residual=residual)              # residual fused


def block_forward(p, x, y):
    x = mha(p["att1"], x, x, heads=NUM_HEADS, causal=True, self_attn=True, residual=x)
    x = mha(p["att2"], x, y, heads=NUM_HEADS, causal=False, self_attn=False, residual=x)
    return pallas_ffn(x, p["ffn"], residual=x)


def positional_encoding_1d(T, d):
    channels = int(np.ceil(d / 2) * 2)
    inv_freq = 1.0 / (10000.0 ** (np.arange(0, channels, 2, dtype=np.float32) / channels))
    pos = np.arange(T, dtype=np.float32)
    sin_inp = np.einsum("i,j->ij", pos, inv_freq)
    emb = np.stack([np.sin(sin_inp), np.cos(sin_inp)], axis=-1).reshape(T, channels)
    return jnp.asarray(emb[:, :d], dtype=jnp.float32)


def decoder_forward(p, img, seq, aux, SEP):
    B, T = seq.shape
    emb = p["emb"][seq]
    idx = jnp.cumsum((seq == SEP).astype(jnp.int32), axis=1)
    idx = jnp.clip(idx, 0, aux.shape[1] - 1)
    mat = jax.nn.one_hot(idx, aux.shape[1], dtype=jnp.float32)
    ctx = jnp.einsum("btn,bnd->btd", mat, aux.astype(jnp.float32))
    mix = jnp.concatenate([emb, ctx], axis=-1)

    x = pallas_linear(mix, p["cat"])
    x = x + positional_encoding_1d(T, x.shape[-1])
    for bp in p["blocks"]:
        x = block_forward(bp, x, img)
    hid = x
    out = pallas_linear(hid, p["out"])
    return hid, out


def table_decoder_forward(params, img, html, back, cell, *, SOC_HTML, EOS_HTML, SEP_CELL):
    B = img.shape[0]
    s_html, e_back, s_cell = html[:, :-1], back[:, :-1], cell[:, :-1]
    e_html = html[:, 1:]
    h_LtoR = jnp.broadcast_to(jnp.eye(2, dtype=jnp.float32)[0], (B, 1, 2))
    h_RtoL = jnp.broadcast_to(jnp.eye(2, dtype=jnp.float32)[1], (B, 1, 2))

    # html and back passes share weights and shapes -> batch them into one 2B-row pass.
    seq_hb = jnp.concatenate([s_html, e_back], axis=0)
    aux_hb = jnp.concatenate([h_LtoR, h_RtoL], axis=0)
    img_hb = jnp.concatenate([img, img], axis=0)
    h_hb, o_hb = decoder_forward(params["html"], img_hb, seq_hb, aux_hb, SEP=EOS_HTML)
    h_html, o_html, o_back = h_hb[:B], o_hb[:B], o_hb[B:]

    h_html, h_grid = fetcher(img, h_html, e_html, SOC_HTML, EOS_HTML)
    _h_cell, o_cell = decoder_forward(params["cell"], img, s_cell, h_grid, SEP=SEP_CELL)

    bbox = pallas_linear(h_html, params["bbox"], act="sigmoid")
    return dict(html=o_html, back=o_back, cell=o_cell, bbox=bbox)


# -----------------------------------------------------------------------------
# Parameter init + one-time prep (pad to 128 lanes, cast weights to bf16, fuse QKV)
# -----------------------------------------------------------------------------

def init_linear(key, din, dout):
    return dict(
        gamma=jnp.ones((din,), jnp.float32),
        beta=jnp.zeros((din,), jnp.float32),
        W=0.02 * jax.random.normal(key, (din, dout), jnp.float32),
        b=jnp.zeros((dout,), jnp.float32),
    )


def init_attn(key, d):
    ks = jax.random.split(key, 4)
    return dict(
        Wq=0.02 * jax.random.normal(ks[0], (d, d), jnp.float32), bq=jnp.zeros((d,), jnp.float32),
        Wk=0.02 * jax.random.normal(ks[1], (d, d), jnp.float32), bk=jnp.zeros((d,), jnp.float32),
        Wv=0.02 * jax.random.normal(ks[2], (d, d), jnp.float32), bv=jnp.zeros((d,), jnp.float32),
        Wo=0.02 * jax.random.normal(ks[3], (d, d), jnp.float32), bo=jnp.zeros((d,), jnp.float32),
    )


def init_block(key, d):
    k1, k2, k3, k4 = jax.random.split(key, 4)
    return dict(att1=init_attn(k1, d), att2=init_attn(k2, d),
                ff1=init_linear(k3, d, d), ff2=init_linear(k4, d, d))


def init_decoder(key, d_input, d_model, num_emb, num_blocks):
    ks = jax.random.split(key, 3 + num_blocks)
    return dict(
        emb=0.02 * jax.random.normal(ks[0], (num_emb, d_model), jnp.float32),
        cat=init_linear(ks[1], d_input, d_model),
        out=init_linear(ks[2], d_model, num_emb),
        blocks=[init_block(ks[3 + i], d_model) for i in range(num_blocks)],
    )


def prep_linear(p, *, use_ln):
    W, b = p["W"], p["b"]
    din, dout = W.shape
    dout_p = _round_up(dout, 128)
    Wp = jnp.zeros((din, dout_p), jnp.bfloat16).at[:, :dout].set(W.astype(jnp.bfloat16))
    bp = jnp.zeros((1, dout_p), jnp.float32).at[:, :dout].set(b.astype(jnp.float32))
    if use_ln:
        g = p["gamma"].reshape(1, din).astype(jnp.float32)
        be = p["beta"].reshape(1, din).astype(jnp.float32)
    else:
        g = jnp.ones((1, din), jnp.float32)
        be = jnp.zeros((1, din), jnp.float32)
    return dict(W=Wp, b=bp, gamma=g, beta=be, dout=dout, use_ln=use_ln)


def prep_attn(p):
    qkv = dict(W=jnp.concatenate([p["Wq"], p["Wk"], p["Wv"]], axis=1),
               b=jnp.concatenate([p["bq"], p["bk"], p["bv"]], axis=0))
    kv = dict(W=jnp.concatenate([p["Wk"], p["Wv"]], axis=1),
              b=jnp.concatenate([p["bk"], p["bv"]], axis=0))
    return dict(
        qkv=prep_linear(qkv, use_ln=False),
        q=prep_linear(dict(W=p["Wq"], b=p["bq"]), use_ln=False),
        kv=prep_linear(kv, use_ln=False),
        o=prep_linear(dict(W=p["Wo"], b=p["bo"]), use_ln=False),
    )


def prep_ffn(ff1, ff2):
    d, dmid = ff1["W"].shape
    dout = ff2["W"].shape[1]
    dout_p = _round_up(dout, 128)
    W2 = jnp.zeros((dmid, dout_p), jnp.bfloat16).at[:, :dout].set(ff2["W"].astype(jnp.bfloat16))
    c2 = jnp.zeros((1, dout_p), jnp.float32).at[:, :dout].set(ff2["b"].astype(jnp.float32))
    return dict(
        g1=ff1["gamma"].reshape(1, d).astype(jnp.float32),
        b1=ff1["beta"].reshape(1, d).astype(jnp.float32),
        W1=ff1["W"].astype(jnp.bfloat16),                 # hidden kept unpadded (2nd LN)
        c1=ff1["b"].reshape(1, dmid).astype(jnp.float32),
        g2=ff2["gamma"].reshape(1, dmid).astype(jnp.float32),
        b2=ff2["beta"].reshape(1, dmid).astype(jnp.float32),
        W2=W2, c2=c2, dout=dout)


def prep_block(bp):
    return dict(att1=prep_attn(bp["att1"]), att2=prep_attn(bp["att2"]),
                ffn=prep_ffn(bp["ff1"], bp["ff2"]))


def prep_decoder(dp):
    return dict(emb=dp["emb"],
                cat=prep_linear(dp["cat"], use_ln=True),
                out=prep_linear(dp["out"], use_ln=True),
                blocks=[prep_block(bp) for bp in dp["blocks"]])


def prep_params(params):
    return dict(html=prep_decoder(params["html"]),
                cell=prep_decoder(params["cell"]),
                bbox=prep_linear(params["bbox"], use_ln=True))


# -----------------------------------------------------------------------------
# Main
# -----------------------------------------------------------------------------

if __name__ == "__main__":
    B, S_IMG, D_MODEL = 2, 16, 32
    L = 9
    NUM_EMB_HTML, NUM_EMB_CELL = 12, 10
    SOS_HTML, EOS_HTML, SOC_HTML = 1, 2, [3, 4]
    SOS_CELL, EOS_CELL, SEP_CELL = 1, 2, 3
    NUM_BLOCKS = 2

    key = jax.random.PRNGKey(0)
    kimg, kp1, kp2, kp3 = jax.random.split(key, 4)

    img = jax.random.normal(kimg, (B, S_IMG, D_MODEL), jnp.float32)
    html = jnp.array([[1, 5, 3, 6, 4, 7, 2, 0, 0],
                      [1, 3, 5, 3, 6, 2, 0, 0, 0]], jnp.int32)
    back = jnp.array([[2, 7, 4, 6, 3, 5, 1, 0, 0],
                      [2, 6, 3, 5, 3, 1, 0, 0, 0]], jnp.int32)
    cell = jnp.array([[1, 4, 5, 3, 6, 7, 2, 0, 0],
                      [1, 8, 3, 9, 2, 0, 0, 0, 0]], jnp.int32)

    raw_params = dict(
        html=init_decoder(kp1, D_MODEL + 2, D_MODEL, NUM_EMB_HTML, NUM_BLOCKS),
        cell=init_decoder(kp2, 2 * D_MODEL, D_MODEL, NUM_EMB_CELL, NUM_BLOCKS),
        bbox=init_linear(kp3, D_MODEL, 4),
    )
    params = prep_params(raw_params)   # one-time pad / bf16-cast / QKV fuse

    out = table_decoder_forward(params, img, html, back, cell,
                                SOC_HTML=SOC_HTML, EOS_HTML=EOS_HTML, SEP_CELL=SEP_CELL)
    out = jax.block_until_ready(out)

    assert out["html"].shape == (B, L - 1, NUM_EMB_HTML)
    assert out["back"].shape == (B, L - 1, NUM_EMB_HTML)
    assert out["cell"].shape == (B, L - 1, NUM_EMB_CELL)
    assert out["bbox"].shape == (B, L - 1, 4)
    assert bool(jnp.all(jnp.isfinite(out["html"])))
    assert bool(jnp.all(jnp.isfinite(out["cell"])))
    assert bool(jnp.all((out["bbox"] >= 0.0) & (out["bbox"] <= 1.0)))
    print("KERNEL_OK")
</pallas_src>

<mosaic_0001>
module attributes {stable_mosaic.version = 11 : i64} {
  func.func @_ln_linear_kernel(%arg0: i32, %arg1: i32, %arg2: memref<32x34xf32, #tpu.memory_space<vmem>>, %arg3: memref<1x34xf32, #tpu.memory_space<vmem>>, %arg4: memref<1x34xf32, #tpu.memory_space<vmem>>, %arg5: memref<34x128xbf16, #tpu.memory_space<vmem>>, %arg6: memref<1x128xf32, #tpu.memory_space<vmem>>, %arg7: memref<32x128xf32, #tpu.memory_space<vmem>>) attributes {dimension_semantics = [#tpu.dimension_semantics<parallel>, #tpu.dimension_semantics<parallel>], iteration_bounds = array<i64: 1, 1>, scalar_prefetch = 0 : i64, scratch_operands = 0 : i64, tpu.core_type = #tpu.core_type<tc>, window_params = [{transform_indices = @transform_0, window_bounds = array<i64: 32, 34>}, {pipeline_mode = #tpu.pipeline_mode<synchronous>, transform_indices = @transform_1, window_bounds = array<i64: 1, 34>}, {pipeline_mode = #tpu.pipeline_mode<synchronous>, transform_indices = @transform_2, window_bounds = array<i64: 1, 34>}, {transform_indices = @transform_3, window_bounds = array<i64: 34, 128>}, {transform_indices = @transform_4, window_bounds = array<i64: 1, 128>}, {transform_indices = @transform_5, window_bounds = array<i64: 32, 128>}]} {
    %c0 = arith.constant 0 : index
    %c0_0 = arith.constant 0 : index
    %0 = vector.load %arg2[%c0, %c0_0] : memref<32x34xf32, #tpu.memory_space<vmem>>, vector<32x34xf32>
    %cst = arith.constant dense<0.000000e+00> : vector<32xf32>
    %1 = vector.multi_reduction <add>, %0, %cst [1] : vector<32x34xf32> to vector<32xf32>
    %2 = vector.shape_cast %1 : vector<32xf32> to vector<32x1xf32>
    %cst_1 = arith.constant 3.400000e+01 : f32
    %3 = vector.broadcast %cst_1 : f32 to vector<32x1xf32>
    %4 = arith.divf %2, %3 : vector<32x1xf32>
    %5 = vector.broadcast %4 : vector<32x1xf32> to vector<32x34xf32>
    %6 = arith.subf %0, %5 : vector<32x34xf32>
    %7 = arith.mulf %6, %6 : vector<32x34xf32>
    %cst_2 = arith.constant dense<0.000000e+00> : vector<32xf32>
    %8 = vector.multi_reduction <add>, %7, %cst_2 [1] : vector<32x34xf32> to vector<32xf32>
    %9 = vector.shape_cast %8 : vector<32xf32> to vector<32x1xf32>
    %cst_3 = arith.constant 3.400000e+01 : f32
    %10 = vector.broadcast %cst_3 : f32 to vector<32x1xf32>
    %11 = arith.divf %9, %10 : vector<32x1xf32>
    %12 = vector.broadcast %4 : vector<32x1xf32> to vector<32x34xf32>
    %13 = arith.subf %0, %12 : vector<32x34xf32>
    %cst_4 = arith.constant 9.99999974E-6 : f32
    %14 = vector.broadcast %cst_4 : f32 to vector<32x1xf32>
    %15 = arith.addf %11, %14 : vector<32x1xf32>
    %16 = math.rsqrt %15 : vector<32x1xf32>
    %17 = vector.broadcast %16 : vector<32x1xf32> to vector<32x34xf32>
    %18 = arith.mulf %13, %17 : vector<32x34xf32>
    %c0_5 = arith.constant 0 : index
    %c0_6 = arith.constant 0 : index
    %19 = vector.load %arg3[%c0_5, %c0_6] : memref<1x34xf32, #tpu.memory_space<vmem>>, vector<1x34xf32>
    %20 = vector.broadcast %19 : vector<1x34xf32> to vector<32x34xf32>
    %21 = arith.mulf %18, %20 : vector<32x34xf32>
    %c0_7 = arith.constant 0 : index
    %c0_8 = arith.constant 0 : index
    %22 = vector.load %arg4[%c0_7, %c0_8] : memref<1x34xf32, #tpu.memory_space<vmem>>, vector<1x34xf32>
    %23 = vector.broadcast %22 : vector<1x34xf32> to vector<32x34xf32>
    %24 = arith.addf %21, %23 : vector<32x34xf32>
    %25 = arith.truncf %24 : vector<32x34xf32> to vector<32x34xbf16>
    %c0_9 = arith.constant 0 : index
    %c0_10 = arith.constant 0 : index
    %26 = vector.load %arg5[%c0_9, %c0_10] : memref<34x128xbf16, #tpu.memory_space<vmem>>, vector<34x128xbf16>
    %cst_11 = arith.constant dense<0.000000e+00> : vector<32x128xf32>
    %27 = tpu.matmul %25, %26, %cst_11 {dimension_numbers = #tpu.dot_dimension_numbers<[1], [0], [0], [1], [0, 0, 1, 1], [], []>} : vector<32x34xbf16>, vector<34x128xbf16>, vector<32x128xf32> -> vector<32x128xf32>
    %c0_12 = arith.constant 0 : index
    %c0_13 = arith.constant 0 : index
    %28 = vector.load %arg6[%c0_12, %c0_13] : memref<1x128xf32, #tpu.memory_space<vmem>>, vector<1x128xf32>
    %29 = vector.broadcast %28 : vector<1x128xf32> to vector<32x128xf32>
    %30 = arith.addf %27, %29 : vector<32x128xf32>
    %c0_14 = arith.constant 0 : index
    %c0_15 = arith.constant 0 : index
    %31 = vector.load %arg7[%c0_14, %c0_15] : memref<32x128xf32, #tpu.memory_space<vmem>>, vector<32x128xf32>
    tpu.vector_store %arg7[%c0_14, %c0_15], %30 {strides = array<i32>} : memref<32x128xf32, #tpu.memory_space<vmem>>, vector<32x128xf32>,
    return
  }
  func.func @transform_0(%arg0: i32, %arg1: i32) -> (i32, i32) {
    %c0_i32 = arith.constant 0 : i32
    %c0_i32_0 = arith.constant 0 : i32
    return %arg1, %c0_i32 : i32, i32
  }
  func.func @transform_1(%arg0: i32, %arg1: i32) -> (i32, i32) {
    %c0_i32 = arith.constant 0 : i32
    %c0_i32_0 = arith.constant 0 : i32
    %c0_i32_1 = arith.constant 0 : i32
    return %c0_i32, %c0_i32_0 : i32, i32
  }
  func.func @transform_2(%arg0: i32, %arg1: i32) -> (i32, i32) {
    %c0_i32 = arith.constant 0 : i32
    %c0_i32_0 = arith.constant 0 : i32
    %c0_i32_1 = arith.constant 0 : i32
    return %c0_i32, %c0_i32_0 : i32, i32
  }
  func.func @transform_3(%arg0: i32, %arg1: i32) -> (i32, i32) {
    %c0_i32 = arith.constant 0 : i32
    %c0_i32_0 = arith.constant 0 : i32
    return %c0_i32, %arg0 : i32, i32
  }
  func.func @transform_4(%arg0: i32, %arg1: i32) -> (i32, i32) {
    %c0_i32 = arith.constant 0 : i32
    %c0_i32_0 = arith.constant 0 : i32
    return %c0_i32, %arg0 : i32, i32
  }
  func.func @transform_5(%arg0: i32, %arg1: i32) -> (i32, i32) {
    %c0_i32 = arith.constant 0 : i32
    return %arg1, %arg0 : i32, i32
  }
}

</mosaic_0001>

<llo_original>
// kernel: tpu_custom_call.1
$region0: #{tpu_custom_call.1}
  #allocation0 [shape = 'u32[]', space=smem, size = 0x4, offset = 0x4, fixed_abs, tag = 'smem constant byte address 0x4 - core index']
  #allocation1 [shape = 'u32[72,128]{1,0:T(1,128)}', space=vmem, size = 0x9000, scoped, tag = 'internal scratch']
  %s0 = inlined_call_operand.hbm [shape: f32[32,34], index: 0, kind: input, shape index: {}]
  %s1 = inlined_call_operand.hbm [shape: f32[1,34], index: 1, kind: input, shape index: {}]
  %s2 = inlined_call_operand.vmem [shape: f32[1,34], index: 2, kind: input, shape index: {}]
  %s3 = inlined_call_operand.hbm [shape: bf16[34,128], index: 3, kind: input, shape index: {}]
  %s4 = inlined_call_operand.vmem [shape: f32[1,128], index: 4, kind: input, shape index: {}]
  %s5 = inlined_call_operand.hbm [shape: f32[32,128], index: 5, kind: output, shape index: {}]
  %s6 = sld [smem:[#allocation0]]
  $region42: #{tpu_custom_call.1} parent=0
    _
  %s8 = ssub.s32 1, %s6
  %s9 = scalar_select 0, %s8, %s6
  $region1: #{tpu_custom_call.1} parent=0
    #allocation2 [shape = 'u8[16384]{0}', space=vmem, size = 0x4000, scoped, tag = 'input window, operand 0, single buffered']
    #allocation3 [shape = 's32[1]{0}', space=sflag, size = 0x4, scoped, tag = 'scoped memory for tpu_custom_call.1']
    #allocation4 [shape = 's32[1]{0}', space=sflag, size = 0x4, scoped, tag = 'scoped memory for tpu_custom_call.1']
    #allocation5 [shape = 'u8[512]{0}', space=vmem, size = 0x400, scoped, tag = 'input window, operand 1, single buffered']
    #allocation6 [shape = 's32[1]{0}', space=sflag, size = 0x4, scoped, tag = 'scoped memory for tpu_custom_call.1']
    #allocation7 [shape = 'u8[10240]{0}', space=vmem, size = 0x2800, scoped, tag = 'input window, operand 3, single buffered']
    #allocation8 [shape = 'u8[16384]{0}', space=vmem, size = 0x4000, scoped, tag = 'output window, operand 0, single buffered']
    %10 = vsyncpa [#allocation3], 0
    %11 = vsyncpa [#allocation6], 0
    %12 = vsyncpa [#allocation4], 0
    // Predicated region
    $region2: #{tpu_custom_call.1} parent=1 // pred_check
      _
    $region3: #{tpu_custom_call.1} parent=1 // pred_check_branch
      %14 = sbr.rel (0) target = $region5
    $region4: #{tpu_custom_call.1} parent=1 // pred_region
      %16 = vsyncadd [#allocation3], 0
      %s17 = sshll.u32 %s0, 4
      %s18 = int_to_ptr.hbm [resolvable:$true] %s17
      %s19 = sshll.u32 [#allocation2], 4
      %s20 = int_to_ptr.vmem [resolvable:$true] %s19
      %25 = dma.hbm_to_vmem [thread:$0]  %s18, 512, %s20, [#allocation3], 128, 128, 8
    $region5: #{tpu_custom_call.1} parent=1 // pred_fallthru
      _
    // Predicated region
    $region6: #{tpu_custom_call.1} parent=1 // pred_check
      _
    $region7: #{tpu_custom_call.1} parent=1 // pred_check_branch
      %27 = sbr.rel (0) target = $region9
    $region8: #{tpu_custom_call.1} parent=1 // pred_region
      %29 = vsyncadd [#allocation6], 0
      %s31 = sshll.u32 %s1, 4
      %s32 = int_to_ptr.hbm [resolvable:$true] %s31
      %s33 = sshll.u32 [#allocation5], 4
      %s34 = int_to_ptr.vmem [resolvable:$true] %s33
      %36 = dma.hbm_to_vmem [thread:$0]  %s32, 16, %s34, [#allocation6]
    $region9: #{tpu_custom_call.1} parent=1 // pred_fallthru
      _
    // Predicated region
    $region10: #{tpu_custom_call.1} parent=1 // pred_check
      _
    $region11: #{tpu_custom_call.1} parent=1 // pred_check_branch
      %38 = sbr.rel (0) target = $region13
    $region12: #{tpu_custom_call.1} parent=1 // pred_region
      _
    $region13: #{tpu_custom_call.1} parent=1 // pred_fallthru
      _
    // Predicated region
    $region14: #{tpu_custom_call.1} parent=1 // pred_check
      _
    $region15: #{tpu_custom_call.1} parent=1 // pred_check_branch
      %40 = sbr.rel (0) target = $region17
    $region16: #{tpu_custom_call.1} parent=1 // pred_region
      %42 = vsyncadd [#allocation6], 0
      %s43 = sshll.u32 %s3, 4
      %s44 = int_to_ptr.hbm [resolvable:$true] %s43
      %s45 = sshll.u32 [#allocation7], 4
      %s46 = int_to_ptr.vmem [resolvable:$true] %s45
      %51 = dma.hbm_to_vmem [thread:$0]  %s44, 320, %s46, [#allocation6], 64, 64, 4
    $region17: #{tpu_custom_call.1} parent=1 // pred_fallthru
      _
    // Predicated region
    $region18: #{tpu_custom_call.1} parent=1 // pred_check
      _
    $region19: #{tpu_custom_call.1} parent=1 // pred_check_branch
      %53 = sbr.rel (0) target = $region21
    $region20: #{tpu_custom_call.1} parent=1 // pred_region
      _
    $region21: #{tpu_custom_call.1} parent=1 // pred_fallthru
      _
    // Predicated region
    $region22: #{tpu_custom_call.1} parent=1 // pred_check
      _
    $region23: #{tpu_custom_call.1} parent=1 // pred_check_branch
      %55 = sbr.rel (0) target = $region25
    $region24: #{tpu_custom_call.1} parent=1 // pred_region
      %57 = dma.done [#allocation3], 512
    $region25: #{tpu_custom_call.1} parent=1 // pred_fallthru
      _
    // Predicated region
    $region26: #{tpu_custom_call.1} parent=1 // pred_check
      _
    $region27: #{tpu_custom_call.1} parent=1 // pred_check_branch
      %59 = sbr.rel (0) target = $region29
    $region28: #{tpu_custom_call.1} parent=1 // pred_region
      %61 = dma.done [#allocation6], 16
    $region29: #{tpu_custom_call.1} parent=1 // pred_fallthru
      _
    // Predicated region
    $region30: #{tpu_custom_call.1} parent=1 // pred_check
      _
    $region31: #{tpu_custom_call.1} parent=1 // pred_check_branch
      %63 = sbr.rel (0) target = $region33
    $region32: #{tpu_custom_call.1} parent=1 // pred_region
      %65 = dma.done [#allocation6], 320
    $region33: #{tpu_custom_call.1} parent=1 // pred_fallthru
      _
    %v67 = vld [vmem:[#allocation2] sm:$0xff]
    %v68 = vld [vmem:[#allocation2 + $0x8] sm:$0xff]
    %v69 = vld [vmem:[#allocation2 + $0x10] sm:$0xff]
    %v70 = vld [vmem:[#allocation2 + $0x18] sm:$0xff]
    %vm71 = vcmask 277504
    %v72 = vsel %vm71, %v67, 0.0
    %73 = vadd.xlane.f32.xlu0 %v72
    %v74 = vpop.xlane.xlu0 %73
    %v75 = vsel %vm71, %v68, 0.0
    %76 = vadd.xlane.f32.xlu0 %v75
    %v77 = vpop.xlane.xlu0 %76
    %v78 = vsel %vm71, %v69, 0.0
    %79 = vadd.xlane.f32.xlu0 %v78
    %v80 = vpop.xlane.xlu0 %79
    %v81 = vsel %vm71, %v70, 0.0
    %82 = vadd.xlane.f32.xlu0 %v81
    %v83 = vpop.xlane.xlu0 %82
    %v84 = vrcp.pop 34.0
    %v85 = vmul.f32 34.0, %v84
    %v86 = vsub.f32 1.0, %v85
    %v87 = vmul.f32 %v84, %v86
    %v88 = vadd.f32 %v84, %v87
    %vm89 = vweird.f32 %v84
    %v90 = vsel %vm89, %v84, %v88
    %v91 = vmul.f32 %v74, %v90
    %v92 = vmul.f32 %v77, %v90
    %v93 = vmul.f32 %v80, %v90
    %v94 = vmul.f32 %v83, %v90
    %v95 = vsub.f32 %v67, %v91
    %v96 = vsub.f32 %v68, %v92
    %v97 = vsub.f32 %v69, %v93
    %v98 = vsub.f32 %v70, %v94
    %v99 = vmul.f32 %v95, %v95
    %v100 = vmul.f32 %v96, %v96
    %v101 = vmul.f32 %v97, %v97
    %v102 = vmul.f32 %v98, %v98
    %v103 = vsel %vm71, %v99, 0.0
    %104 = vadd.xlane.f32.xlu0 %v103
    %v105 = vpop.xlane.xlu0 %104
    %v106 = vsel %vm71, %v100, 0.0
    %107 = vadd.xlane.f32.xlu0 %v106
    %v108 = vpop.xlane.xlu0 %107
    %v109 = vsel %vm71, %v101, 0.0
    %110 = vadd.xlane.f32.xlu0 %v109
    %v111 = vpop.xlane.xlu0 %110
    %v112 = vsel %vm71, %v102, 0.0
    %113 = vadd.xlane.f32.xlu0 %v112
    %v114 = vpop.xlane.xlu0 %113
    %v115 = vmul.f32 %v105, %v90
    %v116 = vmul.f32 %v108, %v90
    %v117 = vmul.f32 %v111, %v90
    %v118 = vmul.f32 %v114, %v90
    %v119 = vadd.f32 %v115, 1e-05
    %v120 = vadd.f32 %v116, 1e-05
    %v121 = vadd.f32 %v117, 1e-05
    %v122 = vadd.f32 %v118, 1e-05
    %v123 = vrsqrt.pop %v119
    %v124 = vmul.f32 %v123, %v119
    %v125 = vmul.f32 %v124, %v123
    %v126 = vmul.f32 0.5, %v125
    %v127 = vsub.f32 1.5, %v126
    %v128 = vmul.f32 %v123, %v127
    %vm129 = vweird.f32 %v119
    %vm130 = vweird.f32 %v123
    %vm131 = vmor %vm129, %vm130
    %v132 = vsel %vm131, %v123, %v128
    %v133 = vrsqrt.pop %v120
    %v134 = vmul.f32 %v133, %v120
    %v135 = vmul.f32 %v134, %v133
    %v136 = vmul.f32 0.5, %v135
    %v137 = vsub.f32 1.5, %v136
    %v138 = vmul.f32 %v133, %v137
    %vm139 = vweird.f32 %v120
    %vm140 = vweird.f32 %v133
    %vm141 = vmor %vm139, %vm140
    %v142 = vsel %vm141, %v133, %v138
    %v143 = vrsqrt.pop %v121
    %v144 = vmul.f32 %v143, %v121
    %v145 = vmul.f32 %v144, %v143
    %v146 = vmul.f32 0.5, %v145
    %v147 = vsub.f32 1.5, %v146
    %v148 = vmul.f32 %v143, %v147
    %vm149 = vweird.f32 %v121
    %vm150 = vweird.f32 %v143
    %vm151 = vmor %vm149, %vm150
    %v152 = vsel %vm151, %v143, %v148
    %v153 = vrsqrt.pop %v122
    %v154 = vmul.f32 %v153, %v122
    %v155 = vmul.f32 %v154, %v153
    %v156 = vmul.f32 0.5, %v155
    %v157 = vsub.f32 1.5, %v156
    %v158 = vmul.f32 %v153, %v157
    %vm159 = vweird.f32 %v122
    %vm160 = vweird.f32 %v153
    %vm161 = vmor %vm159, %vm160
    %v162 = vsel %vm161, %v153, %v158
    %v163 = vmul.f32 %v95, %v132
    %v164 = vmul.f32 %v96, %v142
    %v165 = vmul.f32 %v97, %v152
    %v166 = vmul.f32 %v98, %v162
    %v167 = vld [vmem:[#allocation5] sm:$0x1]
    %v169 = vperm.slane %v167, 0
    %v171 = vmul.f32 %v163, %v169
    %v172 = vmul.f32 %v164, %v169
    %v173 = vmul.f32 %v165, %v169
    %v174 = vmul.f32 %v166, %v169
    %v175 = vld [vmem:[%s2] sm:$0x1]
    %v177 = vperm.slane %v175, 0
    %v179 = vadd.f32 %v171, %v177
    %v180 = vadd.f32 %v172, %v177
    %v181 = vadd.f32 %v173, %v177
    %v182 = vadd.f32 %v174, %v177
    %v183 = vpack.c.bf16 %v180, %v179
    %v184 = vpack.c.bf16 %v182, %v181
    %v185 = vld [vmem:[#allocation7] sm:$0xf]
    %v186 = vld [vmem:[#allocation7 + $0x4] sm:$0xf]
    %v187 = vld [vmem:[#allocation7 + $0x8] sm:$0xf]
    %v188 = vld [vmem:[#allocation7 + $0xc] sm:$0xf]
    %v189 = vld [vmem:[#allocation7 + $0x10] sm:$0x1]
    %v190 = vld [vmem:[%s4] sm:$0x1]
    %v192 = vperm.slane %v190, 0
    %v199 = vunpack.c.l.b16 %v185
    %v200 = vunpack.c.l.b16 %v186
    %v201 = vunpack.c.l.b16 %v187
    %v202 = vunpack.c.l.b16 %v188
    %v203 = vunpack.c.l.b16 %v189
    %v204 = vpack.c.b16 %v200, %v199
    %v205 = vpack.c.b16 %v202, %v201
    %v206 = vpack.c.b16 %v203, %v203
    %v210 = vsel %vm71, %v183, 0
    %v213 = vsel %vm71, %v184, 0
    %vm215 = vcmask 1040384
    %v217 = vsel %vm215, %v206, 0
    %219 = vmatpush.bf16.msra.mxu0 0
    %220 = vmatpush.bf16.msra.mxu0 0
    %221 = vmatpush.bf16.msra.mxu0 0
    %222 = vmatpush.bf16.msra.mxu0 0
    %223 = vmatpush.bf16.msra.mxu0 0
    %224 = vmatpush.bf16.msra.mxu0 %v217
    %225 = vmatpush.bf16.msra.mxu0 %v205
    %226 = vmatpush.bf16.msra.mxu0 %v204
    %227 = vmatmul.bf16.gmra.mxu0 %v210
    %v228 = vpop.f32.mrf.mxu0
    %v229 = vadd.f32 %v192, %v228
    %v230 = vpop.f32.mrf.mxu0
    %v231 = vadd.f32 %v192, %v230
    %232 = vmatmul.bf16.gmra.mxu0 %v213
    %v233 = vpop.f32.mrf.mxu0
    %v234 = vadd.f32 %v192, %v233
    %v235 = vpop.f32.mrf.mxu0
    %v236 = vadd.f32 %v192, %v235
    %237 = vdwg.mxu0
    %238 = vst [vmem:[#allocation8] sm:$0xff] %v229
    %239 = vst [vmem:[#allocation8 + $0x8] sm:$0xff] %v231
    %240 = vst [vmem:[#allocation8 + $0x10] sm:$0xff] %v234
    %241 = vst [vmem:[#allocation8 + $0x18] sm:$0xff] %v236
    // Predicated region
    $region34: #{tpu_custom_call.1} parent=1 // pred_check
      _
    $region35: #{tpu_custom_call.1} parent=1 // pred_check_branch
      %243 = sbr.rel (0) target = $region37
    $region36: #{tpu_custom_call.1} parent=1 // pred_region
      %245 = vsyncadd [#allocation4], 0
      %s246 = sshll.u32 [#allocation8], 4
      %s247 = int_to_ptr.vmem [resolvable:$true] %s246
      %s248 = sshll.u32 %s5, 4
      %s249 = int_to_ptr.hbm [resolvable:$true] %s248
      %254 = dma.vmem_to_hbm [thread:$0]  %s247, 512, %s249, [#allocation4], 128, 128, 8
    $region37: #{tpu_custom_call.1} parent=1 // pred_fallthru
      _
    // Predicated region
    $region38: #{tpu_custom_call.1} parent=1 // pred_check
      _
    $region39: #{tpu_custom_call.1} parent=1 // pred_check_branch
      %256 = sbr.rel (0) target = $region41
    $region40: #{tpu_custom_call.1} parent=1 // pred_region
      %258 = dma.done [#allocation4], 512
    $region41: #{tpu_custom_call.1} parent=1 // pred_fallthru
      _
    %259 = vsyncpa [#allocation3], 1
    %260 = vsyncpa [#allocation6], 1
    %261 = vsyncpa [#allocation4], 1

</llo_original>
